<compile_context>
chip_gen: v7x
topology: tpu7x:2x2x1
jax: 0.10.0
libtpu: 0.0.40
codegen_flags: <defaults>
</compile_context>

<pallas_src>
import functools

import jax
import jax.numpy as jnp
from jax import lax
from jax.experimental import pallas as pl
from jax.experimental.pallas import tpu as pltpu

_BN_EPS = 1e-5       # torch.nn.BatchNorm1d default eps
_COS_EPS = 1e-8      # F.cosine_similarity default eps


def _accent_cls_kernel(x_ref, prm_ref, out_ref, *, D, H, C, w_row, t_row):
    x = x_ref[...].astype(jnp.float32)                      # (B, D)
    inv_b = 1.0 / x.shape[0]                                 # static scalar

    # --- BatchNorm1d(D), training mode. Reduced to a pure per-feature scaling:
    #     gamma1 is folded into W' (wrapper); beta1 / mean-centering / Linear
    #     bias are per-H constants removed exactly by BN2's batch centering.
    sum_x = jnp.sum(x, axis=0, keepdims=True)                # (1, D)
    sum_xx = jnp.sum(x * x, axis=0, keepdims=True)           # (1, D)
    mu1 = sum_x * inv_b
    var1 = jnp.maximum(sum_xx * inv_b - mu1 * mu1, 0.0)      # clamp: one-pass var
    xs = x * lax.rsqrt(var1 + _BN_EPS)                       # (B, D)

    # --- Linear(D, H) on the MXU: bf16 operands, f32 accumulation (single pass).
    w = prm_ref[w_row:w_row + D, 0:H]                        # (D, H) = gamma1[:,None] * W
    h = jnp.dot(xs.astype(jnp.bfloat16), w.astype(jnp.bfloat16),
                preferred_element_type=jnp.float32)          # (B, H)

    # --- BatchNorm1d(H), training mode, one-pass batch stats (f32 VPU math).
    sum_h = jnp.sum(h, axis=0, keepdims=True)
    sum_hh = jnp.sum(h * h, axis=0, keepdims=True)
    mu2 = sum_h * inv_b
    var2 = jnp.maximum(sum_hh * inv_b - mu2 * mu2, 0.0)
    h2 = (h - mu2) * lax.rsqrt(var2 + _BN_EPS)
    h2 = h2 * prm_ref[0:1, 0:H] + prm_ref[1:2, 0:H]          # gamma2 / beta2

    # --- cosine similarity vs. the pre-normalized template columns.
    #     max(sqrt(s), eps) == sqrt(max(s, eps^2)) -> one EUP rsqrt + one mul.
    tpl = prm_ref[t_row:t_row + H, 0:C]                      # (H, C)
    dots = jnp.dot(h2.astype(jnp.bfloat16), tpl.astype(jnp.bfloat16),
                   preferred_element_type=jnp.float32)       # (B, C)
    sumsq = jnp.sum(h2 * h2, axis=1, keepdims=True)          # (B, 1)
    inv_norm = lax.rsqrt(jnp.maximum(sumsq, _COS_EPS * _COS_EPS))
    out_ref[...] = (dots * inv_norm).astype(out_ref.dtype)


def _pad8(n):
    return -(-n // 8) * 8


def prepare_params(gamma1, beta1, w, bias, gamma2, beta2, template):
    """One-time parameter prep; cache (slab, meta) next to the model params.

    Folds applied (exact ONLY while BN2 runs in training mode / batch stats —
    do NOT reuse this slab with running-stats eval-mode BN):
      * W' = gamma1[:, None] * W                (BN1 affine scale)
      * beta1, BN1 mean-centering, Linear bias  -> per-H constants, cancel
      * template columns pre-normalized (static parameter)
    Everything is packed into one (rows, lanes) f32 slab so the kernel needs a
    single parameter DMA; each section starts on an 8-row sublane boundary.
    """
    D, H = w.shape
    C = template.shape[-1]
    del beta1, bias  # additive per-H constants: vanish under BN2's centering

    w_fold = (gamma1[:, None] * w).astype(jnp.float32)                # (D, H)

    tpl = template.reshape(H, C).astype(jnp.float32)
    tnorm = jnp.sqrt(jnp.sum(tpl * tpl, axis=0, keepdims=True))       # (1, C)
    tpl_n = tpl / jnp.maximum(tnorm, _COS_EPS)                        # (H, C)

    w_row = _pad8(2)                       # rows 0..1: gamma2 / beta2
    t_row = w_row + _pad8(D)
    rows = t_row + _pad8(H)
    lanes = max(H, C)

    slab = jnp.zeros((rows, lanes), jnp.float32)
    slab = slab.at[0, :H].set(gamma2.astype(jnp.float32))
    slab = slab.at[1, :H].set(beta2.astype(jnp.float32))
    slab = slab.at[w_row:w_row + D, :H].set(w_fold)
    slab = slab.at[t_row:t_row + H, :C].set(tpl_n)

    meta = dict(D=D, H=H, C=C, w_row=w_row, t_row=t_row)
    return jax.device_put(slab), meta


def accent_cls_forward(x, slab, meta):
    """x: (B, D) f32; (slab, meta) from prepare_params().  Returns (B, C) f32."""
    B = x.shape[0]
    C = meta["C"]
    kernel = functools.partial(_accent_cls_kernel, **meta)
    vmem = pl.BlockSpec(memory_space=pltpu.MemorySpace.VMEM)
    # Whole-array, no-grid kernel: at these shapes every tile fits in one vreg
    # and tiling would only add per-step overhead.
    # TODO(synk): when scoring many utterances, stack them into one call
    # (aim for B >= 128 so the output is lane-dense) or add a grid axis over
    # groups with dimension_semantics=("parallel",) (uses v7x's 2nd TensorCore);
    # a large-D variant needs a D-tiled reduction grid + VMEM (B,H) accumulator
    # sized against 64 MiB physical / 32 MiB scoped VMEM on v7x.
    return pl.pallas_call(
        kernel,
        out_shape=jax.ShapeDtypeStruct((B, C), jnp.float32),
        in_specs=[vmem, vmem],
        out_specs=vmem,
    )(x, slab)


def reference_forward(x, gamma1, beta1, w, bias, gamma2, beta2, template):
    """Pure-JAX reference mirroring the PyTorch forward (training-mode BN)."""
    mu1 = jnp.mean(x, axis=0, keepdims=True)
    var1 = jnp.mean((x - mu1) ** 2, axis=0, keepdims=True)
    x1 = (x - mu1) / jnp.sqrt(var1 + _BN_EPS) * gamma1 + beta1
    h = x1 @ w + bias
    mu2 = jnp.mean(h, axis=0, keepdims=True)
    var2 = jnp.mean((h - mu2) ** 2, axis=0, keepdims=True)
    h2 = (h - mu2) / jnp.sqrt(var2 + _BN_EPS) * gamma2 + beta2
    tpl = template.reshape(template.shape[-2], template.shape[-1])
    dots = h2 @ tpl
    xnorm = jnp.linalg.norm(h2, axis=1, keepdims=True)
    tnorm = jnp.linalg.norm(tpl, axis=0, keepdims=True)
    return dots / (jnp.maximum(xnorm, _COS_EPS) * jnp.maximum(tnorm, _COS_EPS))


if __name__ == "__main__":
    # Shapes consistent with the module: input_dim=32, hidden_dim=16, num_class=8.
    B, D, H, C = 4, 32, 16, 8

    key = jax.random.PRNGKey(0)
    kx, kw, kb, kt = jax.random.split(key, 4)

    x = jax.random.normal(kx, (B, D), dtype=jnp.float32)

    # Non-trivial BN affines so the gamma1/beta1 folds are actually exercised.
    gamma1 = jnp.linspace(0.5, 1.5, D, dtype=jnp.float32)      # bn1 weight
    beta1 = jnp.linspace(-0.2, 0.2, D, dtype=jnp.float32)      # bn1 bias
    w = jax.random.normal(kw, (D, H), jnp.float32) * 0.1       # Linear weight (pre-transposed)
    bias = jax.random.normal(kb, (H,), jnp.float32) * 0.1      # Linear bias
    gamma2 = jnp.linspace(0.8, 1.2, H, dtype=jnp.float32)      # accent BN weight
    beta2 = jnp.linspace(-0.1, 0.1, H, dtype=jnp.float32)      # accent BN bias
    template = jax.random.normal(kt, (1, H, C), jnp.float32)   # module's (1, H, C) parameter

    # One-time parameter prep (cached with the model in real use).
    slab, meta = prepare_params(gamma1, beta1, w, bias, gamma2, beta2, template)

    out = accent_cls_forward(x, slab, meta)
    out = jax.block_until_ready(out)

    ref = reference_forward(x, gamma1, beta1, w, bias, gamma2, beta2, template)
    assert out.shape == (B, C)
    # bf16 MXU operands (f32 accumulation) vs a full-f32 reference: cosine
    # outputs live in [-1, 1], so a few-e-3..1e-2 absolute deviation is expected.
    assert jnp.allclose(out, ref, atol=3e-2, rtol=3e-2), "mismatch vs reference"

    print("KERNEL_OK")
</pallas_src>

<mosaic_0001>
module attributes {stable_mosaic.version = 11 : i64} {
  func.func @_accent_cls_kernel(%arg0: memref<4x32xf32, #tpu.memory_space<vmem>>, %arg1: memref<56x16xf32, #tpu.memory_space<vmem>>, %arg2: memref<4x8xf32, #tpu.memory_space<vmem>>) attributes {dimension_semantics = [], scalar_prefetch = 0 : i64, scratch_operands = 0 : i64, tpu.core_type = #tpu.core_type<tc>} {
    %c0 = arith.constant 0 : index
    %c0_0 = arith.constant 0 : index
    %0 = vector.load %arg0[%c0, %c0_0] : memref<4x32xf32, #tpu.memory_space<vmem>>, vector<4x32xf32>
    %cst = arith.constant dense<0.000000e+00> : vector<32xf32>
    %1 = vector.multi_reduction <add>, %0, %cst [0] : vector<4x32xf32> to vector<32xf32>
    %2 = vector.shape_cast %1 : vector<32xf32> to vector<1x32xf32>
    %3 = arith.mulf %0, %0 : vector<4x32xf32>
    %cst_1 = arith.constant dense<0.000000e+00> : vector<32xf32>
    %4 = vector.multi_reduction <add>, %3, %cst_1 [0] : vector<4x32xf32> to vector<32xf32>
    %5 = vector.shape_cast %4 : vector<32xf32> to vector<1x32xf32>
    %cst_2 = arith.constant 2.500000e-01 : f32
    %6 = vector.broadcast %cst_2 : f32 to vector<1x32xf32>
    %7 = arith.mulf %2, %6 : vector<1x32xf32>
    %cst_3 = arith.constant 2.500000e-01 : f32
    %8 = vector.broadcast %cst_3 : f32 to vector<1x32xf32>
    %9 = arith.mulf %5, %8 : vector<1x32xf32>
    %10 = arith.mulf %7, %7 : vector<1x32xf32>
    %11 = arith.subf %9, %10 : vector<1x32xf32>
    %cst_4 = arith.constant 0.000000e+00 : f32
    %12 = vector.broadcast %cst_4 : f32 to vector<1x32xf32>
    %13 = arith.maximumf %11, %12 : vector<1x32xf32>
    %cst_5 = arith.constant 9.99999974E-6 : f32
    %14 = vector.broadcast %cst_5 : f32 to vector<1x32xf32>
    %15 = arith.addf %13, %14 : vector<1x32xf32>
    %16 = math.rsqrt %15 : vector<1x32xf32>
    %17 = vector.broadcast %16 : vector<1x32xf32> to vector<4x32xf32>
    %18 = arith.mulf %0, %17 : vector<4x32xf32>
    %c8 = arith.constant 8 : index
    %c0_6 = arith.constant 0 : index
    %19 = vector.load %arg1[%c8, %c0_6] : memref<56x16xf32, #tpu.memory_space<vmem>>, vector<32x16xf32>
    %20 = arith.truncf %18 : vector<4x32xf32> to vector<4x32xbf16>
    %21 = arith.truncf %19 : vector<32x16xf32> to vector<32x16xbf16>
    %cst_7 = arith.constant dense<0.000000e+00> : vector<4x16xf32>
    %22 = tpu.matmul %20, %21, %cst_7 {dimension_numbers = #tpu.dot_dimension_numbers<[1], [0], [0], [1], [0, 0, 1, 1], [], []>} : vector<4x32xbf16>, vector<32x16xbf16>, vector<4x16xf32> -> vector<4x16xf32>
    %cst_8 = arith.constant dense<0.000000e+00> : vector<16xf32>
    %23 = vector.multi_reduction <add>, %22, %cst_8 [0] : vector<4x16xf32> to vector<16xf32>
    %24 = vector.shape_cast %23 : vector<16xf32> to vector<1x16xf32>
    %25 = arith.mulf %22, %22 : vector<4x16xf32>
    %cst_9 = arith.constant dense<0.000000e+00> : vector<16xf32>
    %26 = vector.multi_reduction <add>, %25, %cst_9 [0] : vector<4x16xf32> to vector<16xf32>
    %27 = vector.shape_cast %26 : vector<16xf32> to vector<1x16xf32>
    %cst_10 = arith.constant 2.500000e-01 : f32
    %28 = vector.broadcast %cst_10 : f32 to vector<1x16xf32>
    %29 = arith.mulf %24, %28 : vector<1x16xf32>
    %cst_11 = arith.constant 2.500000e-01 : f32
    %30 = vector.broadcast %cst_11 : f32 to vector<1x16xf32>
    %31 = arith.mulf %27, %30 : vector<1x16xf32>
    %32 = arith.mulf %29, %29 : vector<1x16xf32>
    %33 = arith.subf %31, %32 : vector<1x16xf32>
    %cst_12 = arith.constant 0.000000e+00 : f32
    %34 = vector.broadcast %cst_12 : f32 to vector<1x16xf32>
    %35 = arith.maximumf %33, %34 : vector<1x16xf32>
    %36 = vector.broadcast %29 : vector<1x16xf32> to vector<4x16xf32>
    %37 = arith.subf %22, %36 : vector<4x16xf32>
    %cst_13 = arith.constant 9.99999974E-6 : f32
    %38 = vector.broadcast %cst_13 : f32 to vector<1x16xf32>
    %39 = arith.addf %35, %38 : vector<1x16xf32>
    %40 = math.rsqrt %39 : vector<1x16xf32>
    %41 = vector.broadcast %40 : vector<1x16xf32> to vector<4x16xf32>
    %42 = arith.mulf %37, %41 : vector<4x16xf32>
    %c0_14 = arith.constant 0 : index
    %c0_15 = arith.constant 0 : index
    %43 = vector.load %arg1[%c0_14, %c0_15] : memref<56x16xf32, #tpu.memory_space<vmem>>, vector<1x16xf32>
    %44 = vector.broadcast %43 : vector<1x16xf32> to vector<4x16xf32>
    %45 = arith.mulf %42, %44 : vector<4x16xf32>
    %c1 = arith.constant 1 : index
    %c0_16 = arith.constant 0 : index
    %46 = vector.load %arg1[%c1, %c0_16] : memref<56x16xf32, #tpu.memory_space<vmem>>, vector<1x16xf32>
    %47 = vector.broadcast %46 : vector<1x16xf32> to vector<4x16xf32>
    %48 = arith.addf %45, %47 : vector<4x16xf32>
    %c40 = arith.constant 40 : index
    %c0_17 = arith.constant 0 : index
    %49 = vector.load %arg1[%c40, %c0_17] : memref<56x16xf32, #tpu.memory_space<vmem>>, vector<16x8xf32>
    %50 = arith.truncf %48 : vector<4x16xf32> to vector<4x16xbf16>
    %51 = arith.truncf %49 : vector<16x8xf32> to vector<16x8xbf16>
    %cst_18 = arith.constant dense<0.000000e+00> : vector<4x8xf32>
    %52 = tpu.matmul %50, %51, %cst_18 {dimension_numbers = #tpu.dot_dimension_numbers<[1], [0], [0], [1], [0, 0, 1, 1], [], []>} : vector<4x16xbf16>, vector<16x8xbf16>, vector<4x8xf32> -> vector<4x8xf32>
    %53 = arith.mulf %48, %48 : vector<4x16xf32>
    %cst_19 = arith.constant dense<0.000000e+00> : vector<4xf32>
    %54 = vector.multi_reduction <add>, %53, %cst_19 [1] : vector<4x16xf32> to vector<4xf32>
    %55 = vector.shape_cast %54 : vector<4xf32> to vector<4x1xf32>
    %cst_20 = arith.constant 1.000000e-16 : f32
    %56 = vector.broadcast %cst_20 : f32 to vector<4x1xf32>
    %57 = arith.maximumf %55, %56 : vector<4x1xf32>
    %58 = math.rsqrt %57 : vector<4x1xf32>
    %59 = vector.broadcast %58 : vector<4x1xf32> to vector<4x8xf32>
    %60 = arith.mulf %52, %59 : vector<4x8xf32>
    %c0_21 = arith.constant 0 : index
    %c0_22 = arith.constant 0 : index
    %61 = vector.load %arg2[%c0_21, %c0_22] : memref<4x8xf32, #tpu.memory_space<vmem>>, vector<4x8xf32>
    tpu.vector_store %arg2[%c0_21, %c0_22], %60 {strides = array<i32>} : memref<4x8xf32, #tpu.memory_space<vmem>>, vector<4x8xf32>,
    return
  }
}

</mosaic_0001>

<llo_original>
// kernel: tpu_custom_call.1
$region0: #{tpu_custom_call.1}
  #allocation0 [shape = 'u32[]', space=smem, size = 0x4, offset = 0x4, fixed_abs, tag = 'smem constant byte address 0x4 - core index']
  #allocation1 [shape = 'u32[144,128]{1,0:T(1,128)}', space=vmem, size = 0x12000, scoped, tag = 'internal scratch']
  %s0 = inlined_call_operand.vmem [shape: f32[4,32], index: 0, kind: input, shape index: {}]
  %s1 = inlined_call_operand.vmem [shape: f32[56,16], index: 1, kind: input, shape index: {}]
  %s2 = inlined_call_operand.hbm [shape: f32[4,8], index: 2, kind: output, shape index: {}]
  %s3 = sld [smem:[#allocation0]]
  $region18: #{tpu_custom_call.1} parent=0
    _
  %s5 = ssub.s32 1, %s3
  %s6 = scalar_select 0, %s5, %s3
  $region1: #{tpu_custom_call.1} parent=0
    #allocation2 [shape = 'u8[2048]{0}', space=vmem, size = 0x800, scoped, tag = 'output window, operand 0, single buffered']
    #allocation3 [shape = 's32[1]{0}', space=sflag, size = 0x4, scoped, tag = 'scoped memory for tpu_custom_call.1']
    %7 = vsyncpa [#allocation3], 0
    // Predicated region
    $region2: #{tpu_custom_call.1} parent=1 // pred_check
      _
    $region3: #{tpu_custom_call.1} parent=1 // pred_check_branch
      %9 = sbr.rel (0) target = $region5
    $region4: #{tpu_custom_call.1} parent=1 // pred_region
      _
    $region5: #{tpu_custom_call.1} parent=1 // pred_fallthru
      _
    // Predicated region
    $region6: #{tpu_custom_call.1} parent=1 // pred_check
      _
    $region7: #{tpu_custom_call.1} parent=1 // pred_check_branch
      %11 = sbr.rel (0) target = $region9
    $region8: #{tpu_custom_call.1} parent=1 // pred_region
      _
    $region9: #{tpu_custom_call.1} parent=1 // pred_fallthru
      _
    %v13 = vld [vmem:[%s0] sm:$0xf]
    %vm14 = vcmask 257024
    %v15 = vsel %vm14, %v13, 0.0
    %v16 = vrot.slane %v15, 4
    %v17 = vadd.f32 %v15, %v16
    %v18 = vrot.slane %v17, 2
    %v19 = vadd.f32 %v17, %v18
    %v20 = vrot.slane %v19, 1
    %v21 = vadd.f32 %v19, %v20
    %v22 = vmul.f32 %v13, %v13
    %v23 = vsel %vm14, %v22, 0.0
    %v24 = vrot.slane %v23, 4
    %v25 = vadd.f32 %v23, %v24
    %v26 = vrot.slane %v25, 2
    %v27 = vadd.f32 %v25, %v26
    %v28 = vrot.slane %v27, 1
    %v29 = vadd.f32 %v27, %v28
    %v30 = vmul.f32 %v21, 0.25
    %v31 = vmul.f32 %v29, 0.25
    %v32 = vmul.f32 %v30, %v30
    %v33 = vsub.f32 %v31, %v32
    %v34 = vmax.f32 %v33, 0.0
    %v35 = vadd.f32 %v34, 1e-05
    %v36 = vrsqrt.pop %v35
    %v37 = vmul.f32 %v13, %v36
    %v38 = vld [vmem:[%s1 + $0x8] sm:$0xff]
    %v39 = vld [vmem:[%s1 + $0x10] sm:$0xff]
    %v40 = vld [vmem:[%s1 + $0x18] sm:$0xff]
    %v41 = vld [vmem:[%s1 + $0x20] sm:$0xff]
    %v42 = vpack.c.bf16 %v37, %v37
    %v43 = vpack.c.bf16 %v39, %v38
    %v44 = vpack.c.bf16 %v41, %v40
    %vm45 = vcmask 261120
    %v47 = vsel %vm45, %v42, 0
    %49 = vmatprep.subr.bf16.mxu0 0
    %50 = vmatpush1.bf16.msra.mxu0 %v43
    %51 = vmatprep.subr.bf16.mxu0 0
    %52 = vmatpush1.bf16.msra.mxu0 %v44
    %53 = vmatprep.subr.bf16.mxu0 0
    %54 = vmatpush1.bf16.msra.mxu0 0
    %55 = vmatprep.subr.bf16.mxu0 0
    %56 = vmatpush1.bf16.msra.mxu0 0
    %57 = vmatprep.subr.bf16.mxu0 0
    %58 = vmatpush1.bf16.msra.mxu0 0
    %59 = vmatprep.subr.bf16.mxu0 0
    %60 = vmatpush1.bf16.msra.mxu0 0
    %61 = vmatprep.subr.bf16.mxu0 0
    %62 = vmatpush1.bf16.msra.mxu0 0
    %63 = vmatprep.subr.bf16.mxu0 0
    %64 = vmatpush1.bf16.msra.mxu0 0
    %65 = vmatprep.subr.bf16.mxu0 0
    %66 = vmatpush1.bf16.msra.mxu0 0
    %67 = vmatprep.subr.bf16.mxu0 0
    %68 = vmatpush1.bf16.msra.mxu0 0
    %69 = vmatprep.subr.bf16.mxu0 0
    %70 = vmatpush1.bf16.msra.mxu0 0
    %71 = vmatprep.subr.bf16.mxu0 0
    %72 = vmatpush1.bf16.msra.mxu0 0
    %73 = vmatprep.subr.bf16.mxu0 0
    %74 = vmatpush1.bf16.msra.mxu0 0
    %75 = vmatprep.subr.bf16.mxu0 0
    %76 = vmatpush1.bf16.msra.mxu0 0
    %77 = vmatprep.subr.bf16.mxu0 0
    %78 = vmatpush1.bf16.msra.mxu0 0
    %79 = vmatprep.subr.bf16.mxu0 0
    %80 = vmatpush1.bf16.msra.mxu0 0
    %81 = vmatprep.mubr.bf16.mxu0 0
    %82 = vmatmul.mubr.bf16.gmra.mrb[0].mxu0 %v47
    %v83 = vpop.f32.mrb[0].mxu0
    %v84 = vadd.f32 0.0, %v83
    %v85 = vpop.f32.mrb[0].mxu0
    %v86 = vpop.f32.mrb[0].mxu0
    %v87 = vpop.f32.mrb[0].mxu0
    %88 = vdwg.mxu0
    %vm89 = vcmask 125952
    %v90 = vsel %vm89, %v84, 0.0
    %v91 = vrot.slane %v90, 4
    %v92 = vadd.f32 %v90, %v91
    %v93 = vrot.slane %v92, 2
    %v94 = vadd.f32 %v92, %v93
    %v95 = vrot.slane %v94, 1
    %v96 = vadd.f32 %v94, %v95
    %v97 = vmul.f32 %v84, %v84
    %v98 = vsel %vm89, %v97, 0.0
    %v99 = vrot.slane %v98, 4
    %v100 = vadd.f32 %v98, %v99
    %v101 = vrot.slane %v100, 2
    %v102 = vadd.f32 %v100, %v101
    %v103 = vrot.slane %v102, 1
    %v104 = vadd.f32 %v102, %v103
    %v105 = vmul.f32 %v96, 0.25
    %v106 = vmul.f32 %v104, 0.25
    %v107 = vmul.f32 %v105, %v105
    %v108 = vsub.f32 %v106, %v107
    %v109 = vmax.f32 %v108, 0.0
    %v110 = vsub.f32 %v84, %v105
    %v111 = vadd.f32 %v109, 1e-05
    %v112 = vrsqrt.pop %v111
    %v113 = vmul.f32 %v110, %v112
    %v114 = vld [vmem:[%s1] sm:$0x1]
    %v115 = vlaneseq
    %v116 = vshrl.u32 %v115, 7
    %v117 = vsub.s32 0, %v116
    %v118 = vrot.slane %v114, %v117
    %v119 = vmul.f32 %v113, %v118
    %v120 = vld [vmem:[%s1 + $0x1] sm:$0x1]
    %v121 = vlaneseq
    %v122 = vshrl.u32 %v121, 7
    %v123 = vsub.s32 0, %v122
    %v124 = vrot.slane %v120, %v123
    %v125 = vadd.f32 %v119, %v124
    %v126 = vld [vmem:[%s1 + $0x28] sm:$0xff]
    %v127 = vld [vmem:[%s1 + $0x30] sm:$0xff]
    %v128 = vpack.c.bf16 %v125, %v125
    %v129 = vpack.c.bf16 %v127, %v126
    %vm130 = vcmask 130048
    %v132 = vsel %vm130, %v128, 0
    %134 = vmatprep.subr.bf16.mxu0 0
    %135 = vmatpush1.bf16.msra.mxu0 %v129
    %136 = vmatprep.subr.bf16.mxu0 0
    %137 = vmatpush1.bf16.msra.mxu0 0
    %138 = vmatprep.subr.bf16.mxu0 0
    %139 = vmatpush1.bf16.msra.mxu0 0
    %140 = vmatprep.subr.bf16.mxu0 0
    %141 = vmatpush1.bf16.msra.mxu0 0
    %142 = vmatprep.subr.bf16.mxu0 0
    %143 = vmatpush1.bf16.msra.mxu0 0
    %144 = vmatprep.subr.bf16.mxu0 0
    %145 = vmatpush1.bf16.msra.mxu0 0
    %146 = vmatprep.subr.bf16.mxu0 0
    %147 = vmatpush1.bf16.msra.mxu0 0
    %148 = vmatprep.subr.bf16.mxu0 0
    %149 = vmatpush1.bf16.msra.mxu0 0
    %150 = vmatprep.subr.bf16.mxu0 0
    %151 = vmatpush1.bf16.msra.mxu0 0
    %152 = vmatprep.subr.bf16.mxu0 0
    %153 = vmatpush1.bf16.msra.mxu0 0
    %154 = vmatprep.subr.bf16.mxu0 0
    %155 = vmatpush1.bf16.msra.mxu0 0
    %156 = vmatprep.subr.bf16.mxu0 0
    %157 = vmatpush1.bf16.msra.mxu0 0
    %158 = vmatprep.subr.bf16.mxu0 0
    %159 = vmatpush1.bf16.msra.mxu0 0
    %160 = vmatprep.subr.bf16.mxu0 0
    %161 = vmatpush1.bf16.msra.mxu0 0
    %162 = vmatprep.subr.bf16.mxu0 0
    %163 = vmatpush1.bf16.msra.mxu0 0
    %164 = vmatprep.subr.bf16.mxu0 0
    %165 = vmatpush1.bf16.msra.mxu0 0
    %166 = vmatprep.mubr.bf16.mxu0 0
    %167 = vmatmul.mubr.bf16.gmra.mrb[0].mxu0 %v132
    %v168 = vpop.f32.mrb[0].mxu0
    %v169 = vadd.f32 0.0, %v168
    %v170 = vpop.f32.mrb[0].mxu0
    %v171 = vpop.f32.mrb[0].mxu0
    %v172 = vpop.f32.mrb[0].mxu0
    %173 = vdwg.mxu0
    %v174 = vmul.f32 %v125, %v125
    %v175 = vsel %vm89, %v174, 0.0
    %176 = vadd.xlane.f32.xlu0 %v175
    %v177 = vpop.xlane.xlu0 %176
    %v178 = vmax.f32 %v177, 1e-16
    %v179 = vrsqrt.pop %v178
    %v180 = vmul.f32 %v169, %v179
    %vm181 = vcmask 60416
    %182 = vst.msk [vmem:[#allocation2] sm:$0xf] %vm181, %v180
    // Predicated region
    $region10: #{tpu_custom_call.1} parent=1 // pred_check
      _
    $region11: #{tpu_custom_call.1} parent=1 // pred_check_branch
      %184 = sbr.rel (0) target = $region13
    $region12: #{tpu_custom_call.1} parent=1 // pred_region
      %s186 = ssub.s32 64, 64
      %187 = vsyncadd [#allocation3], %s186
      %s189 = sshll.u32 [#allocation2], 4
      %s190 = int_to_ptr.vmem [resolvable:$true] %s189
      %192 = dma.vmem_to_hbm [thread:$0]  %s190, 64, %s2, [#allocation3]
    $region13: #{tpu_custom_call.1} parent=1 // pred_fallthru
      _
    // Predicated region
    $region14: #{tpu_custom_call.1} parent=1 // pred_check
      _
    $region15: #{tpu_custom_call.1} parent=1 // pred_check_branch
      %194 = sbr.rel (0) target = $region17
    $region16: #{tpu_custom_call.1} parent=1 // pred_region
      %195 = dma.done [#allocation3], 64
    $region17: #{tpu_custom_call.1} parent=1 // pred_fallthru
      _
    %196 = vsyncpa [#allocation3], 1

</llo_original>
